<compile_context>
chip_gen: v7x
topology: tpu7x:2x2x1
jax: 0.10.0
libtpu: 0.0.40
codegen_flags: <defaults>
</compile_context>

<pallas_src>
import jax
import jax.numpy as jnp
from jax.experimental import pallas as pl
from jax.experimental.pallas import tpu as pltpu  # noqa: F401  (TPU backend)

# ----------------------------- configuration --------------------------------
B = 2          # batch
C = 3          # image channels (BLIP-2 takes RGB)
H = W = 16     # image spatial size
P = 8          # patch size
NP = (H // P) * (W // P)          # number of image patches = 4
PATCH_DIM = C * P * P             # 192
D = 32         # hidden size (qformer hidden)
NQ = 8         # number of learned query tokens
DFF = 64       # qformer FFN hidden
MLP_H = 64     # MLP head hidden
OUT = 4        # MLP head output dim


# ------------------------------ Pallas kernel --------------------------------
def _layernorm(x, gamma, beta, eps=1e-5):
    mu = jnp.mean(x, axis=-1, keepdims=True)
    var = jnp.mean((x - mu) ** 2, axis=-1, keepdims=True)
    return (x - mu) * jax.lax.rsqrt(var + eps) * gamma + beta


def combined_kernel(patches_ref, pw_ref, pb_ref,
                    qtok_ref, wq_ref, wkv_ref, wo_ref, bias_ref,
                    g1_ref, b1_ref,
                    wff1_ref, bff1_ref, wff2_ref, bff2_ref,
                    g2_ref, b2_ref,
                    w1_ref, bh1_ref, w2_ref, bh2_ref,
                    o_ref):
    f32 = jnp.float32

    # ---- 1. patch embedding: [B*Np, C*P*P] @ [C*P*P, D] ---------------------
    img = jnp.dot(patches_ref[...], pw_ref[...],
                  preferred_element_type=f32) + pb_ref[...]          # [B*Np, D]

    # ---- 2. Q-Former cross-attention block (whole batch, block-diag mask) ---
    qtok = qtok_ref[...]                                             # [Nq, D]
    qtok_all = jnp.concatenate([qtok] * B, axis=0)                   # [B*Nq, D]

    q = jnp.dot(qtok_all, wq_ref[...], preferred_element_type=f32)   # [B*Nq, D]
    kv = jnp.dot(img, wkv_ref[...], preferred_element_type=f32)      # [B*Np, 2D]
    k = kv[:, :D]                                                    # [B*Np, D]
    v = kv[:, D:]                                                    # [B*Np, D]

    scale = 1.0 / jnp.sqrt(jnp.float32(D))
    # contract last dims directly (no explicit k.T relayout)
    scores = jax.lax.dot_general(
        q, k, (((1,), (1,)), ((), ())),
        preferred_element_type=f32) * scale                          # [B*Nq, B*Np]
    scores = scores + bias_ref[...]   # block-diagonal mask (0 / -1e30)

    m = jnp.max(scores, axis=-1, keepdims=True)
    e = jnp.exp(scores - m)
    attn = e * pl.reciprocal(jnp.sum(e, axis=-1, keepdims=True), approx=True)

    ctx = jnp.dot(attn, v, preferred_element_type=f32)               # [B*Nq, D]
    h = qtok_all + jnp.dot(ctx, wo_ref[...], preferred_element_type=f32)
    h = _layernorm(h, g1_ref[...], b1_ref[...])

    ff = jnp.dot(h, wff1_ref[...], preferred_element_type=f32) + bff1_ref[...]
    # TODO(synk): torch nn.GELU defaults to exact erf GELU; tanh approximation
    # is used here (numerically very close) to stay on guaranteed Mosaic ops.
    ff = jax.nn.gelu(ff)
    ff = jnp.dot(ff, wff2_ref[...], preferred_element_type=f32) + bff2_ref[...]
    h = _layernorm(h + ff, g2_ref[...], b2_ref[...])                 # [B*Nq, D]

    # ---- 3. last_hidden_state[:, 0, :] + 2-layer MLP head -------------------
    feat = jnp.concatenate([h[b * NQ:b * NQ + 1, :] for b in range(B)],
                           axis=0)                                   # [B, D]
    hid = jnp.dot(feat, w1_ref[...], preferred_element_type=f32) + bh1_ref[...]
    hid = jnp.maximum(hid, 0.0)
    o_ref[...] = jnp.dot(hid, w2_ref[...],
                         preferred_element_type=f32) + bh2_ref[...]  # [B, OUT]


# ------------------------------ host-side wrapper ----------------------------
def extract_patches_nchw(pixel_values):
    # pixel_values: [B, C, H, W] (NCHW, PyTorch convention)
    x = pixel_values.reshape(B, C, H // P, P, W // P, P)
    x = x.transpose(0, 2, 4, 1, 3, 5)              # [B, hP, wP, C, P, P]
    return x.reshape(B * NP, PATCH_DIM)


def _full(shape):
    return pl.BlockSpec(shape, lambda: (0,) * len(shape))


@jax.jit
def combined_model_forward(pixel_values, params):
    patches = extract_patches_nchw(pixel_values)                 # [B*Np, PATCH_DIM]
    # fuse K/V projections into one wider matmul operand
    wkv = jnp.concatenate([params["wk"], params["wv"]], axis=1)  # [D, 2D]
    # additive block-diagonal attention bias (query b attends only to image b)
    row_b = jnp.arange(B * NQ) // NQ
    col_b = jnp.arange(B * NP) // NP
    attn_bias = jnp.where(row_b[:, None] == col_b[None, :],
                          0.0, -1e30).astype(jnp.float32)        # [B*Nq, B*Np]

    return pl.pallas_call(
        combined_kernel,
        out_shape=jax.ShapeDtypeStruct((B, OUT), jnp.float32),
        in_specs=[
            _full((B * NP, PATCH_DIM)),    # patches
            _full((PATCH_DIM, D)),         # patch_w
            _full((1, D)),                 # patch_b
            _full((NQ, D)),                # q_tokens
            _full((D, D)),                 # wq
            _full((D, 2 * D)),             # wkv (concat of wk|wv)
            _full((D, D)),                 # wo
            _full((B * NQ, B * NP)),       # attention bias mask
            _full((1, D)), _full((1, D)),  # ln1 gamma, beta
            _full((D, DFF)),               # wff1
            _full((1, DFF)),               # bff1
            _full((DFF, D)),               # wff2
            _full((1, D)),                 # bff2
            _full((1, D)), _full((1, D)),  # ln2 gamma, beta
            _full((D, MLP_H)),             # head w1
            _full((1, MLP_H)),             # head b1
            _full((MLP_H, OUT)),           # head w2
            _full((1, OUT)),               # head b2
        ],
        out_specs=_full((B, OUT)),
    )(patches, params["patch_w"], params["patch_b"],
      params["q_tokens"], params["wq"], wkv, params["wo"], attn_bias,
      params["ln1_g"], params["ln1_b"],
      params["wff1"], params["bff1"], params["wff2"], params["bff2"],
      params["ln2_g"], params["ln2_b"],
      params["w1"], params["b1"], params["w2"], params["b2"])


def init_params(key):
    ks = jax.random.split(key, 16)
    s = 0.05
    return {
        "patch_w": s * jax.random.normal(ks[0], (PATCH_DIM, D), jnp.float32),
        "patch_b": jnp.zeros((1, D), jnp.float32),
        "q_tokens": s * jax.random.normal(ks[1], (NQ, D), jnp.float32),
        "wq": s * jax.random.normal(ks[2], (D, D), jnp.float32),
        "wk": s * jax.random.normal(ks[3], (D, D), jnp.float32),
        "wv": s * jax.random.normal(ks[4], (D, D), jnp.float32),
        "wo": s * jax.random.normal(ks[5], (D, D), jnp.float32),
        "ln1_g": jnp.ones((1, D), jnp.float32),
        "ln1_b": jnp.zeros((1, D), jnp.float32),
        "wff1": s * jax.random.normal(ks[6], (D, DFF), jnp.float32),
        "bff1": jnp.zeros((1, DFF), jnp.float32),
        "wff2": s * jax.random.normal(ks[7], (DFF, D), jnp.float32),
        "bff2": jnp.zeros((1, D), jnp.float32),
        "ln2_g": jnp.ones((1, D), jnp.float32),
        "ln2_b": jnp.zeros((1, D), jnp.float32),
        "w1": s * jax.random.normal(ks[8], (D, MLP_H), jnp.float32),
        "b1": jnp.zeros((1, MLP_H), jnp.float32),
        "w2": s * jax.random.normal(ks[9], (MLP_H, OUT), jnp.float32),
        "b2": jnp.zeros((1, OUT), jnp.float32),
    }


if __name__ == "__main__":
    key = jax.random.PRNGKey(0)
    pkey, xkey = jax.random.split(key)
    params = init_params(pkey)
    # TODO(synk): the real BLIP-2 vision tower + multi-layer Q-Former is
    # replaced by a single representative patch-embed + cross-attn block.
    pixel_values = jax.random.normal(xkey, (B, C, H, W), jnp.float32)  # NCHW
    out = combined_model_forward(pixel_values, params)
    jax.block_until_ready(out)
    assert out.shape == (B, OUT)
    print("KERNEL_OK")
</pallas_src>

<mosaic_0001>
module attributes {stable_mosaic.version = 11 : i64} {
  func.func @combined_kernel(%arg0: memref<8x192xf32, #tpu.memory_space<vmem>>, %arg1: memref<192x32xf32, #tpu.memory_space<vmem>>, %arg2: memref<1x32xf32, #tpu.memory_space<vmem>>, %arg3: memref<8x32xf32, #tpu.memory_space<vmem>>, %arg4: memref<32x32xf32, #tpu.memory_space<vmem>>, %arg5: memref<32x64xf32, #tpu.memory_space<vmem>>, %arg6: memref<32x32xf32, #tpu.memory_space<vmem>>, %arg7: memref<16x8xf32, #tpu.memory_space<vmem>>, %arg8: memref<1x32xf32, #tpu.memory_space<vmem>>, %arg9: memref<1x32xf32, #tpu.memory_space<vmem>>, %arg10: memref<32x64xf32, #tpu.memory_space<vmem>>, %arg11: memref<1x64xf32, #tpu.memory_space<vmem>>, %arg12: memref<64x32xf32, #tpu.memory_space<vmem>>, %arg13: memref<1x32xf32, #tpu.memory_space<vmem>>, %arg14: memref<1x32xf32, #tpu.memory_space<vmem>>, %arg15: memref<1x32xf32, #tpu.memory_space<vmem>>, %arg16: memref<32x64xf32, #tpu.memory_space<vmem>>, %arg17: memref<1x64xf32, #tpu.memory_space<vmem>>, %arg18: memref<64x4xf32, #tpu.memory_space<vmem>>, %arg19: memref<1x4xf32, #tpu.memory_space<vmem>>, %arg20: memref<2x4xf32, #tpu.memory_space<vmem>>) attributes {dimension_semantics = [], scalar_prefetch = 0 : i64, scratch_operands = 0 : i64, tpu.core_type = #tpu.core_type<tc>} {
    %c0 = arith.constant 0 : index
    %c0_0 = arith.constant 0 : index
    %0 = vector.load %arg0[%c0, %c0_0] : memref<8x192xf32, #tpu.memory_space<vmem>>, vector<8x192xf32>
    %c0_1 = arith.constant 0 : index
    %c0_2 = arith.constant 0 : index
    %1 = vector.load %arg1[%c0_1, %c0_2] : memref<192x32xf32, #tpu.memory_space<vmem>>, vector<192x32xf32>
    %cst = arith.constant dense<0.000000e+00> : vector<8x32xf32>
    %2 = tpu.matmul %0, %1, %cst {dimension_numbers = #tpu.dot_dimension_numbers<[1], [0], [0], [1], [0, 0, 1, 1], [], []>} : vector<8x192xf32>, vector<192x32xf32>, vector<8x32xf32> -> vector<8x32xf32>
    %c0_3 = arith.constant 0 : index
    %c0_4 = arith.constant 0 : index
    %3 = vector.load %arg2[%c0_3, %c0_4] : memref<1x32xf32, #tpu.memory_space<vmem>>, vector<1x32xf32>
    %4 = vector.broadcast %3 : vector<1x32xf32> to vector<8x32xf32>
    %5 = arith.addf %2, %4 : vector<8x32xf32>
    %c0_5 = arith.constant 0 : index
    %c0_6 = arith.constant 0 : index
    %6 = vector.load %arg3[%c0_5, %c0_6] : memref<8x32xf32, #tpu.memory_space<vmem>>, vector<8x32xf32>
    %7 = tpu.concatenate %6, %6 in 0 : vector<8x32xf32>, vector<8x32xf32> -> vector<16x32xf32>
    %c0_7 = arith.constant 0 : index
    %c0_8 = arith.constant 0 : index
    %8 = vector.load %arg4[%c0_7, %c0_8] : memref<32x32xf32, #tpu.memory_space<vmem>>, vector<32x32xf32>
    %cst_9 = arith.constant dense<0.000000e+00> : vector<16x32xf32>
    %9 = tpu.matmul %7, %8, %cst_9 {dimension_numbers = #tpu.dot_dimension_numbers<[1], [0], [0], [1], [0, 0, 1, 1], [], []>} : vector<16x32xf32>, vector<32x32xf32>, vector<16x32xf32> -> vector<16x32xf32>
    %c0_10 = arith.constant 0 : index
    %c0_11 = arith.constant 0 : index
    %10 = vector.load %arg5[%c0_10, %c0_11] : memref<32x64xf32, #tpu.memory_space<vmem>>, vector<32x64xf32>
    %cst_12 = arith.constant dense<0.000000e+00> : vector<8x64xf32>
    %11 = tpu.matmul %5, %10, %cst_12 {dimension_numbers = #tpu.dot_dimension_numbers<[1], [0], [0], [1], [0, 0, 1, 1], [], []>} : vector<8x32xf32>, vector<32x64xf32>, vector<8x64xf32> -> vector<8x64xf32>
    %12 = vector.extract_strided_slice %11 {offsets = [0, 0], sizes = [8, 32], strides = [1, 1]} : vector<8x64xf32> to vector<8x32xf32>
    %13 = vector.extract_strided_slice %11 {offsets = [0, 32], sizes = [8, 32], strides = [1, 1]} : vector<8x64xf32> to vector<8x32xf32>
    %cst_13 = arith.constant 3.200000e+01 : f32
    %14 = math.sqrt %cst_13 : f32
    %cst_14 = arith.constant 1.000000e+00 : f32
    %15 = arith.divf %cst_14, %14 : f32
    %cst_15 = arith.constant dense<0.000000e+00> : vector<16x8xf32>
    %16 = tpu.matmul %9, %12, %cst_15 {dimension_numbers = #tpu.dot_dimension_numbers<[1], [1], [0], [0], [0, 0, 1, 0], [], []>} : vector<16x32xf32>, vector<8x32xf32>, vector<16x8xf32> -> vector<16x8xf32>
    %17 = vector.broadcast %15 : f32 to vector<16x8xf32>
    %18 = arith.mulf %16, %17 : vector<16x8xf32>
    %c0_16 = arith.constant 0 : index
    %c0_17 = arith.constant 0 : index
    %19 = vector.load %arg7[%c0_16, %c0_17] : memref<16x8xf32, #tpu.memory_space<vmem>>, vector<16x8xf32>
    %20 = arith.addf %18, %19 : vector<16x8xf32>
    %cst_18 = arith.constant dense<0xFF800000> : vector<16xf32>
    %21 = vector.multi_reduction <maximumf>, %20, %cst_18 [1] : vector<16x8xf32> to vector<16xf32>
    %22 = vector.shape_cast %21 : vector<16xf32> to vector<16x1xf32>
    %23 = vector.broadcast %22 : vector<16x1xf32> to vector<16x8xf32>
    %24 = arith.subf %20, %23 : vector<16x8xf32>
    %25 = math.exp %24 : vector<16x8xf32>
    %cst_19 = arith.constant dense<0.000000e+00> : vector<16xf32>
    %26 = vector.multi_reduction <add>, %25, %cst_19 [1] : vector<16x8xf32> to vector<16xf32>
    %27 = vector.shape_cast %26 : vector<16xf32> to vector<16x1xf32>
    %28 = tpu.reciprocal %27 {approx = true} : vector<16x1xf32> -> vector<16x1xf32>
    %29 = vector.broadcast %28 : vector<16x1xf32> to vector<16x8xf32>
    %30 = arith.mulf %25, %29 : vector<16x8xf32>
    %cst_20 = arith.constant dense<0.000000e+00> : vector<16x32xf32>
    %31 = tpu.matmul %30, %13, %cst_20 {dimension_numbers = #tpu.dot_dimension_numbers<[1], [0], [0], [1], [0, 0, 1, 1], [], []>} : vector<16x8xf32>, vector<8x32xf32>, vector<16x32xf32> -> vector<16x32xf32>
    %c0_21 = arith.constant 0 : index
    %c0_22 = arith.constant 0 : index
    %32 = vector.load %arg6[%c0_21, %c0_22] : memref<32x32xf32, #tpu.memory_space<vmem>>, vector<32x32xf32>
    %cst_23 = arith.constant dense<0.000000e+00> : vector<16x32xf32>
    %33 = tpu.matmul %31, %32, %cst_23 {dimension_numbers = #tpu.dot_dimension_numbers<[1], [0], [0], [1], [0, 0, 1, 1], [], []>} : vector<16x32xf32>, vector<32x32xf32>, vector<16x32xf32> -> vector<16x32xf32>
    %34 = arith.addf %7, %33 : vector<16x32xf32>
    %c0_24 = arith.constant 0 : index
    %c0_25 = arith.constant 0 : index
    %35 = vector.load %arg8[%c0_24, %c0_25] : memref<1x32xf32, #tpu.memory_space<vmem>>, vector<1x32xf32>
    %c0_26 = arith.constant 0 : index
    %c0_27 = arith.constant 0 : index
    %36 = vector.load %arg9[%c0_26, %c0_27] : memref<1x32xf32, #tpu.memory_space<vmem>>, vector<1x32xf32>
    %cst_28 = arith.constant dense<0.000000e+00> : vector<16xf32>
    %37 = vector.multi_reduction <add>, %34, %cst_28 [1] : vector<16x32xf32> to vector<16xf32>
    %38 = vector.shape_cast %37 : vector<16xf32> to vector<16x1xf32>
    %cst_29 = arith.constant 3.200000e+01 : f32
    %39 = vector.broadcast %cst_29 : f32 to vector<16x1xf32>
    %40 = arith.divf %38, %39 : vector<16x1xf32>
    %41 = vector.broadcast %40 : vector<16x1xf32> to vector<16x32xf32>
    %42 = arith.subf %34, %41 : vector<16x32xf32>
    %43 = arith.mulf %42, %42 : vector<16x32xf32>
    %cst_30 = arith.constant dense<0.000000e+00> : vector<16xf32>
    %44 = vector.multi_reduction <add>, %43, %cst_30 [1] : vector<16x32xf32> to vector<16xf32>
    %45 = vector.shape_cast %44 : vector<16xf32> to vector<16x1xf32>
    %cst_31 = arith.constant 3.200000e+01 : f32
    %46 = vector.broadcast %cst_31 : f32 to vector<16x1xf32>
    %47 = arith.divf %45, %46 : vector<16x1xf32>
    %48 = vector.broadcast %40 : vector<16x1xf32> to vector<16x32xf32>
    %49 = arith.subf %34, %48 : vector<16x32xf32>
    %cst_32 = arith.constant 9.99999974E-6 : f32
    %50 = vector.broadcast %cst_32 : f32 to vector<16x1xf32>
    %51 = arith.addf %47, %50 : vector<16x1xf32>
    %52 = math.rsqrt %51 : vector<16x1xf32>
    %53 = vector.broadcast %52 : vector<16x1xf32> to vector<16x32xf32>
    %54 = arith.mulf %49, %53 : vector<16x32xf32>
    %55 = vector.broadcast %35 : vector<1x32xf32> to vector<16x32xf32>
    %56 = arith.mulf %54, %55 : vector<16x32xf32>
    %57 = vector.broadcast %36 : vector<1x32xf32> to vector<16x32xf32>
    %58 = arith.addf %56, %57 : vector<16x32xf32>
    %c0_33 = arith.constant 0 : index
    %c0_34 = arith.constant 0 : index
    %59 = vector.load %arg10[%c0_33, %c0_34] : memref<32x64xf32, #tpu.memory_space<vmem>>, vector<32x64xf32>
    %cst_35 = arith.constant dense<0.000000e+00> : vector<16x64xf32>
    %60 = tpu.matmul %58, %59, %cst_35 {dimension_numbers = #tpu.dot_dimension_numbers<[1], [0], [0], [1], [0, 0, 1, 1], [], []>} : vector<16x32xf32>, vector<32x64xf32>, vector<16x64xf32> -> vector<16x64xf32>
    %c0_36 = arith.constant 0 : index
    %c0_37 = arith.constant 0 : index
    %61 = vector.load %arg11[%c0_36, %c0_37] : memref<1x64xf32, #tpu.memory_space<vmem>>, vector<1x64xf32>
    %62 = vector.broadcast %61 : vector<1x64xf32> to vector<16x64xf32>
    %63 = arith.addf %60, %62 : vector<16x64xf32>
    %64 = arith.mulf %63, %63 : vector<16x64xf32>
    %65 = arith.mulf %63, %64 : vector<16x64xf32>
    %cst_38 = arith.constant 4.471500e-02 : f32
    %66 = vector.broadcast %cst_38 : f32 to vector<16x64xf32>
    %67 = arith.mulf %66, %65 : vector<16x64xf32>
    %68 = arith.addf %63, %67 : vector<16x64xf32>
    %cst_39 = arith.constant 0.797884583 : f32
    %69 = vector.broadcast %cst_39 : f32 to vector<16x64xf32>
    %70 = arith.mulf %69, %68 : vector<16x64xf32>
    %71 = math.tanh %70 : vector<16x64xf32>
    %cst_40 = arith.constant 1.000000e+00 : f32
    %72 = vector.broadcast %cst_40 : f32 to vector<16x64xf32>
    %73 = arith.addf %72, %71 : vector<16x64xf32>
    %cst_41 = arith.constant 5.000000e-01 : f32
    %74 = vector.broadcast %cst_41 : f32 to vector<16x64xf32>
    %75 = arith.mulf %74, %73 : vector<16x64xf32>
    %76 = arith.mulf %63, %75 : vector<16x64xf32>
    %c0_42 = arith.constant 0 : index
    %c0_43 = arith.constant 0 : index
    %77 = vector.load %arg12[%c0_42, %c0_43] : memref<64x32xf32, #tpu.memory_space<vmem>>, vector<64x32xf32>
    %cst_44 = arith.constant dense<0.000000e+00> : vector<16x32xf32>
    %78 = tpu.matmul %76, %77, %cst_44 {dimension_numbers = #tpu.dot_dimension_numbers<[1], [0], [0], [1], [0, 0, 1, 1], [], []>} : vector<16x64xf32>, vector<64x32xf32>, vector<16x32xf32> -> vector<16x32xf32>
    %c0_45 = arith.constant 0 : index
    %c0_46 = arith.constant 0 : index
    %79 = vector.load %arg13[%c0_45, %c0_46] : memref<1x32xf32, #tpu.memory_space<vmem>>, vector<1x32xf32>
    %80 = vector.broadcast %79 : vector<1x32xf32> to vector<16x32xf32>
    %81 = arith.addf %78, %80 : vector<16x32xf32>
    %82 = arith.addf %58, %81 : vector<16x32xf32>
    %c0_47 = arith.constant 0 : index
    %c0_48 = arith.constant 0 : index
    %83 = vector.load %arg14[%c0_47, %c0_48] : memref<1x32xf32, #tpu.memory_space<vmem>>, vector<1x32xf32>
    %c0_49 = arith.constant 0 : index
    %c0_50 = arith.constant 0 : index
    %84 = vector.load %arg15[%c0_49, %c0_50] : memref<1x32xf32, #tpu.memory_space<vmem>>, vector<1x32xf32>
    %cst_51 = arith.constant dense<0.000000e+00> : vector<16xf32>
    %85 = vector.multi_reduction <add>, %82, %cst_51 [1] : vector<16x32xf32> to vector<16xf32>
    %86 = vector.shape_cast %85 : vector<16xf32> to vector<16x1xf32>
    %cst_52 = arith.constant 3.200000e+01 : f32
    %87 = vector.broadcast %cst_52 : f32 to vector<16x1xf32>
    %88 = arith.divf %86, %87 : vector<16x1xf32>
    %89 = vector.broadcast %88 : vector<16x1xf32> to vector<16x32xf32>
    %90 = arith.subf %82, %89 : vector<16x32xf32>
    %91 = arith.mulf %90, %90 : vector<16x32xf32>
    %cst_53 = arith.constant dense<0.000000e+00> : vector<16xf32>
    %92 = vector.multi_reduction <add>, %91, %cst_53 [1] : vector<16x32xf32> to vector<16xf32>
    %93 = vector.shape_cast %92 : vector<16xf32> to vector<16x1xf32>
    %cst_54 = arith.constant 3.200000e+01 : f32
    %94 = vector.broadcast %cst_54 : f32 to vector<16x1xf32>
    %95 = arith.divf %93, %94 : vector<16x1xf32>
    %96 = vector.broadcast %88 : vector<16x1xf32> to vector<16x32xf32>
    %97 = arith.subf %82, %96 : vector<16x32xf32>
    %cst_55 = arith.constant 9.99999974E-6 : f32
    %98 = vector.broadcast %cst_55 : f32 to vector<16x1xf32>
    %99 = arith.addf %95, %98 : vector<16x1xf32>
    %100 = math.rsqrt %99 : vector<16x1xf32>
    %101 = vector.broadcast %100 : vector<16x1xf32> to vector<16x32xf32>
    %102 = arith.mulf %97, %101 : vector<16x32xf32>
    %103 = vector.broadcast %83 : vector<1x32xf32> to vector<16x32xf32>
    %104 = arith.mulf %102, %103 : vector<16x32xf32>
    %105 = vector.broadcast %84 : vector<1x32xf32> to vector<16x32xf32>
    %106 = arith.addf %104, %105 : vector<16x32xf32>
    %107 = vector.extract_strided_slice %106 {offsets = [0, 0], sizes = [1, 32], strides = [1, 1]} : vector<16x32xf32> to vector<1x32xf32>
    %108 = vector.extract_strided_slice %106 {offsets = [8, 0], sizes = [1, 32], strides = [1, 1]} : vector<16x32xf32> to vector<1x32xf32>
    %109 = tpu.concatenate %107, %108 in 0 : vector<1x32xf32>, vector<1x32xf32> -> vector<2x32xf32>
    %c0_56 = arith.constant 0 : index
    %c0_57 = arith.constant 0 : index
    %110 = vector.load %arg16[%c0_56, %c0_57] : memref<32x64xf32, #tpu.memory_space<vmem>>, vector<32x64xf32>
    %cst_58 = arith.constant dense<0.000000e+00> : vector<2x64xf32>
    %111 = tpu.matmul %109, %110, %cst_58 {dimension_numbers = #tpu.dot_dimension_numbers<[1], [0], [0], [1], [0, 0, 1, 1], [], []>} : vector<2x32xf32>, vector<32x64xf32>, vector<2x64xf32> -> vector<2x64xf32>
    %c0_59 = arith.constant 0 : index
    %c0_60 = arith.constant 0 : index
    %112 = vector.load %arg17[%c0_59, %c0_60] : memref<1x64xf32, #tpu.memory_space<vmem>>, vector<1x64xf32>
    %113 = vector.broadcast %112 : vector<1x64xf32> to vector<2x64xf32>
    %114 = arith.addf %111, %113 : vector<2x64xf32>
    %cst_61 = arith.constant 0.000000e+00 : f32
    %115 = vector.broadcast %cst_61 : f32 to vector<2x64xf32>
    %116 = arith.maximumf %114, %115 : vector<2x64xf32>
    %c0_62 = arith.constant 0 : index
    %c0_63 = arith.constant 0 : index
    %117 = vector.load %arg18[%c0_62, %c0_63] : memref<64x4xf32, #tpu.memory_space<vmem>>, vector<64x4xf32>
    %cst_64 = arith.constant dense<0.000000e+00> : vector<2x4xf32>
    %118 = tpu.matmul %116, %117, %cst_64 {dimension_numbers = #tpu.dot_dimension_numbers<[1], [0], [0], [1], [0, 0, 1, 1], [], []>} : vector<2x64xf32>, vector<64x4xf32>, vector<2x4xf32> -> vector<2x4xf32>
    %c0_65 = arith.constant 0 : index
    %c0_66 = arith.constant 0 : index
    %119 = vector.load %arg19[%c0_65, %c0_66] : memref<1x4xf32, #tpu.memory_space<vmem>>, vector<1x4xf32>
    %120 = vector.broadcast %119 : vector<1x4xf32> to vector<2x4xf32>
    %121 = arith.addf %118, %120 : vector<2x4xf32>
    %c0_67 = arith.constant 0 : index
    %c0_68 = arith.constant 0 : index
    %122 = vector.load %arg20[%c0_67, %c0_68] : memref<2x4xf32, #tpu.memory_space<vmem>>, vector<2x4xf32>
    tpu.vector_store %arg20[%c0_67, %c0_68], %121 {strides = array<i32>} : memref<2x4xf32, #tpu.memory_space<vmem>>, vector<2x4xf32>,
    return
  }
}

</mosaic_0001>

<llo_original>
// kernel: combined_model_forward.1
$region0: #{combined_model_forward.1}
  #allocation0 [shape = 'u32[]', space=smem, size = 0x4, offset = 0x4, fixed_abs, tag = 'smem constant byte address 0x4 - core index']
  #allocation1 [shape = 'u32[144,128]{1,0:T(1,128)}', space=vmem, size = 0x12000, scoped, tag = 'internal scratch']
  %s0 = inlined_call_operand.vmem [shape: f32[8,192], index: 0, kind: input, shape index: {}]
  %s1 = inlined_call_operand.vmem [shape: f32[192,32], index: 1, kind: input, shape index: {}]
  %s2 = inlined_call_operand.vmem [shape: f32[1,32], index: 2, kind: input, shape index: {}]
  %s3 = inlined_call_operand.vmem [shape: f32[8,32], index: 3, kind: input, shape index: {}]
  %s4 = inlined_call_operand.vmem [shape: f32[32,32], index: 4, kind: input, shape index: {}]
  %s5 = inlined_call_operand.vmem [shape: f32[32,64], index: 5, kind: input, shape index: {}]
  %s6 = inlined_call_operand.vmem [shape: f32[32,32], index: 6, kind: input, shape index: {}]
  %s7 = inlined_call_operand.vmem [shape: f32[16,8], index: 7, kind: input, shape index: {}]
  %s8 = inlined_call_operand.vmem [shape: f32[1,32], index: 8, kind: input, shape index: {}]
  %s9 = inlined_call_operand.vmem [shape: f32[1,32], index: 9, kind: input, shape index: {}]
  %s10 = inlined_call_operand.vmem [shape: f32[32,64], index: 10, kind: input, shape index: {}]
  %s11 = inlined_call_operand.vmem [shape: f32[1,64], index: 11, kind: input, shape index: {}]
  %s12 = inlined_call_operand.vmem [shape: f32[64,32], index: 12, kind: input, shape index: {}]
  %s13 = inlined_call_operand.vmem [shape: f32[1,32], index: 13, kind: input, shape index: {}]
  %s14 = inlined_call_operand.vmem [shape: f32[1,32], index: 14, kind: input, shape index: {}]
  %s15 = inlined_call_operand.vmem [shape: f32[1,32], index: 15, kind: input, shape index: {}]
  %s16 = inlined_call_operand.vmem [shape: f32[32,64], index: 16, kind: input, shape index: {}]
  %s17 = inlined_call_operand.vmem [shape: f32[1,64], index: 17, kind: input, shape index: {}]
  %s18 = inlined_call_operand.vmem [shape: f32[64,4], index: 18, kind: input, shape index: {}]
  %s19 = inlined_call_operand.vmem [shape: f32[1,4], index: 19, kind: input, shape index: {}]
  %s20 = inlined_call_operand.hbm [shape: f32[2,4], index: 20, kind: output, shape index: {}]
  %s21 = sld [smem:[#allocation0]]
  $region90: #{combined_model_forward.1} parent=0
    _
  %s23 = ssub.s32 1, %s21
  %s24 = scalar_select 0, %s23, %s21
  $region1: #{combined_model_forward.1} parent=0
    #allocation2 [shape = 'u8[1024]{0}', space=vmem, size = 0x400, scoped, tag = 'output window, operand 0, single buffered']
    #allocation3 [shape = 's32[1]{0}', space=sflag, size = 0x4, scoped, tag = 'scoped memory for combined_model_forward.1']
    %25 = vsyncpa [#allocation3], 0
    // Predicated region
    $region2: #{combined_model_forward.1} parent=1 // pred_check
      _
    $region3: #{combined_model_forward.1} parent=1 // pred_check_branch
      %27 = sbr.rel (0) target = $region5
    $region4: #{combined_model_forward.1} parent=1 // pred_region
      _
    $region5: #{combined_model_forward.1} parent=1 // pred_fallthru
      _
    // Predicated region
    $region6: #{combined_model_forward.1} parent=1 // pred_check
      _
    $region7: #{combined_model_forward.1} parent=1 // pred_check_branch
      %29 = sbr.rel (0) target = $region9
    $region8: #{combined_model_forward.1} parent=1 // pred_region
      _
    $region9: #{combined_model_forward.1} parent=1 // pred_fallthru
      _
    // Predicated region
    $region10: #{combined_model_forward.1} parent=1 // pred_check
      _
    $region11: #{combined_model_forward.1} parent=1 // pred_check_branch
      %31 = sbr.rel (0) target = $region13
    $region12: #{combined_model_forward.1} parent=1 // pred_region
      _
    $region13: #{combined_model_forward.1} parent=1 // pred_fallthru
      _
    // Predicated region
    $region14: #{combined_model_forward.1} parent=1 // pred_check
      _
    $region15: #{combined_model_forward.1} parent=1 // pred_check_branch
      %33 = sbr.rel (0) target = $region17
    $region16: #{combined_model_forward.1} parent=1 // pred_region
      _
    $region17: #{combined_model_forward.1} parent=1 // pred_fallthru
      _
    // Predicated region
    $region18: #{combined_model_forward.1} parent=1 // pred_check
      _
    $region19: #{combined_model_forward.1} parent=1 // pred_check_branch
      %35 = sbr.rel (0) target = $region21
    $region20: #{combined_model_forward.1} parent=1 // pred_region
      _
    $region21: #{combined_model_forward.1} parent=1 // pred_fallthru
      _
    // Predicated region
    $region22: #{combined_model_forward.1} parent=1 // pred_check
      _
    $region23: #{combined_model_forward.1} parent=1 // pred_check_branch
      %37 = sbr.rel (0) target = $region25
    $region24: #{combined_model_forward.1} parent=1 // pred_region
      _
    $region25: #{combined_model_forward.1} parent=1 // pred_fallthru
      _
    // Predicated region
    $region26: #{combined_model_forward.1} parent=1 // pred_check
      _
    $region27: #{combined_model_forward.1} parent=1 // pred_check_branch
      %39 = sbr.rel (0) target = $region29
    $region28: #{combined_model_forward.1} parent=1 // pred_region
      _
    $region29: #{combined_model_forward.1} parent=1 // pred_fallthru
      _
    // Predicated region
    $region30: #{combined_model_forward.1} parent=1 // pred_check
      _
    $region31: #{combined_model_forward.1} parent=1 // pred_check_branch
      %41 = sbr.rel (0) target = $region33
    $region32: #{combined_model_forward.1} parent=1 // pred_region
      _
    $region33: #{combined_model_forward.1} parent=1 // pred_fallthru
      _
    // Predicated region
    $region34: #{combined_model_forward.1} parent=1 // pred_check
      _
    $region35: #{combined_model_forward.1} parent=1 // pred_check_branch
      %43 = sbr.rel (0) target = $region37
    $region36: #{combined_model_forward.1} parent=1 // pred_region
      _
    $region37: #{combined_model_forward.1} parent=1 // pred_fallthru
      _
    // Predicated region
    $region38: #{combined_model_forward.1} parent=1 // pred_check
      _
    $region39: #{combined_model_forward.1} parent=1 // pred_check_branch
      %45 = sbr.rel (0) target = $region41
    $region40: #{combined_model_forward.1} parent=1 // pred_region
      _
    $region41: #{combined_model_forward.1} parent=1 // pred_fallthru
      _
    // Predicated region
    $region42: #{combined_model_forward.1} parent=1 // pred_check
      _
    $region43: #{combined_model_forward.1} parent=1 // pred_check_branch
      %47 = sbr.rel (0) target = $region45
    $region44: #{combined_model_forward.1} parent=1 // pred_region
      _
    $region45: #{combined_model_forward.1} parent=1 // pred_fallthru
      _
    // Predicated region
    $region46: #{combined_model_forward.1} parent=1 // pred_check
      _
    $region47: #{combined_model_forward.1} parent=1 // pred_check_branch
      %49 = sbr.rel (0) target = $region49
    $region48: #{combined_model_forward.1} parent=1 // pred_region
      _
    $region49: #{combined_model_forward.1} parent=1 // pred_fallthru
      _
    // Predicated region
    $region50: #{combined_model_forward.1} parent=1 // pred_check
      _
    $region51: #{combined_model_forward.1} parent=1 // pred_check_branch
      %51 = sbr.rel (0) target = $region53
    $region52: #{combined_model_forward.1} parent=1 // pred_region
      _
    $region53: #{combined_model_forward.1} parent=1 // pred_fallthru
      _
    // Predicated region
    $region54: #{combined_model_forward.1} parent=1 // pred_check
      _
    $region55: #{combined_model_forward.1} parent=1 // pred_check_branch
      %53 = sbr.rel (0) target = $region57
    $region56: #{combined_model_forward.1} parent=1 // pred_region
      _
    $region57: #{combined_model_forward.1} parent=1 // pred_fallthru
      _
    // Predicated region
    $region58: #{combined_model_forward.1} parent=1 // pred_check
      _
    $region59: #{combined_model_forward.1} parent=1 // pred_check_branch
      %55 = sbr.rel (0) target = $region61
    $region60: #{combined_model_forward.1} parent=1 // pred_region
      _
    $region61: #{combined_model_forward.1} parent=1 // pred_fallthru
      _
    // Predicated region
    $region62: #{combined_model_forward.1} parent=1 // pred_check
      _
    $region63: #{combined_model_forward.1} parent=1 // pred_check_branch
      %57 = sbr.rel (0) target = $region65
    $region64: #{combined_model_forward.1} parent=1 // pred_region
      _
    $region65: #{combined_model_forward.1} parent=1 // pred_fallthru
      _
    // Predicated region
    $region66: #{combined_model_forward.1} parent=1 // pred_check
      _
    $region67: #{combined_model_forward.1} parent=1 // pred_check_branch
      %59 = sbr.rel (0) target = $region69
    $region68: #{combined_model_forward.1} parent=1 // pred_region
      _
    $region69: #{combined_model_forward.1} parent=1 // pred_fallthru
      _
    // Predicated region
    $region70: #{combined_model_forward.1} parent=1 // pred_check
      _
    $region71: #{combined_model_forward.1} parent=1 // pred_check_branch
      %61 = sbr.rel (0) target = $region73
    $region72: #{combined_model_forward.1} parent=1 // pred_region
      _
    $region73: #{combined_model_forward.1} parent=1 // pred_fallthru
      _
    // Predicated region
    $region74: #{combined_model_forward.1} parent=1 // pred_check
      _
    $region75: #{combined_model_forward.1} parent=1 // pred_check_branch
      %63 = sbr.rel (0) target = $region77
    $region76: #{combined_model_forward.1} parent=1 // pred_region
      _
    $region77: #{combined_model_forward.1} parent=1 // pred_fallthru
      _
    // Predicated region
    $region78: #{combined_model_forward.1} parent=1 // pred_check
      _
    $region79: #{combined_model_forward.1} parent=1 // pred_check_branch
      %65 = sbr.rel (0) target = $region81
    $region80: #{combined_model_forward.1} parent=1 // pred_region
      _
    $region81: #{combined_model_forward.1} parent=1 // pred_fallthru
      _
    %v66 = vld [vmem:[%s0] sm:$0xff]
    %v67 = vld [vmem:[%s0 + $0x8] sm:$0xff]
    %v68 = vld [vmem:[%s1] sm:$0xff]
    %v69 = vld [vmem:[%s1 + $0x8] sm:$0xff]
    %v70 = vld [vmem:[%s1 + $0x10] sm:$0xff]
    %v71 = vld [vmem:[%s1 + $0x18] sm:$0xff]
    %v72 = vld [vmem:[%s1 + $0x20] sm:$0xff]
    %v73 = vld [vmem:[%s1 + $0x28] sm:$0xff]
    %v74 = vld [vmem:[%s1 + $0x30] sm:$0xff]
    %v75 = vld [vmem:[%s1 + $0x38] sm:$0xff]
    %v76 = vld [vmem:[%s1 + $0x40] sm:$0xff]
    %v77 = vld [vmem:[%s1 + $0x48] sm:$0xff]
    %v78 = vld [vmem:[%s1 + $0x50] sm:$0xff]
    %v79 = vld [vmem:[%s1 + $0x58] sm:$0xff]
    %v80 = vld [vmem:[%s1 + $0x60] sm:$0xff]
    %v81 = vld [vmem:[%s1 + $0x68] sm:$0xff]
    %v82 = vld [vmem:[%s1 + $0x70] sm:$0xff]
    %v83 = vld [vmem:[%s1 + $0x78] sm:$0xff]
    %v84 = vld [vmem:[%s1 + $0x80] sm:$0xff]
    %v85 = vld [vmem:[%s1 + $0x88] sm:$0xff]
    %v86 = vld [vmem:[%s1 + $0x90] sm:$0xff]
    %v87 = vld [vmem:[%s1 + $0x98] sm:$0xff]
    %v88 = vld [vmem:[%s1 + $0xa0] sm:$0xff]
    %v89 = vld [vmem:[%s1 + $0xa8] sm:$0xff]
    %v90 = vld [vmem:[%s1 + $0xb0] sm:$0xff]
    %v91 = vld [vmem:[%s1 + $0xb8] sm:$0xff]
    %v92 = vld [vmem:[%s2] sm:$0x1]
    %v94 = vlaneseq
    %v95 = vshrl.u32 %v94, 7
    %v96 = vsub.s32 0, %v95
    %v97 = vrot.slane %v92, %v96
    %vm99 = vcmask 523264
    %v101 = vsel %vm99, %v67, 0
    %103 = vmatprep.subr.mxu0 0.0
    %104 = vmatpush1.msra.mxu0 %v68
    %105 = vmatprep.subr.mxu0 0.0
    %106 = vmatpush1.msra.mxu0 %v69
    %107 = vmatprep.subr.mxu0 0.0
    %108 = vmatpush1.msra.mxu0 %v70
    %109 = vmatprep.subr.mxu0 0.0
    %110 = vmatpush1.msra.mxu0 %v71
    %111 = vmatprep.subr.mxu0 0.0
    %112 = vmatpush1.msra.mxu0 %v72
    %113 = vmatprep.subr.mxu0 0.0
    %114 = vmatpush1.msra.mxu0 %v73
    %115 = vmatprep.subr.mxu0 0.0
    %116 = vmatpush1.msra.mxu0 %v74
    %117 = vmatprep.subr.mxu0 0.0
    %118 = vmatpush1.msra.mxu0 %v75
    %119 = vmatprep.subr.mxu0 0.0
    %120 = vmatpush1.msra.mxu0 %v76
    %121 = vmatprep.subr.mxu0 0.0
    %122 = vmatpush1.msra.mxu0 %v77
    %123 = vmatprep.subr.mxu0 0.0
    %124 = vmatpush1.msra.mxu0 %v78
    %125 = vmatprep.subr.mxu0 0.0
    %126 = vmatpush1.msra.mxu0 %v79
    %127 = vmatprep.subr.mxu0 0.0
    %128 = vmatpush1.msra.mxu0 %v80
    %129 = vmatprep.subr.mxu0 0.0
    %130 = vmatpush1.msra.mxu0 %v81
    %131 = vmatprep.subr.mxu0 0.0
    %132 = vmatpush1.msra.mxu0 %v82
    %133 = vmatprep.subr.mxu0 0.0
    %134 = vmatpush1.msra.mxu0 %v83
    %135 = vmatprep.subr.mxu0 0.0
    %136 = vmatpush1.msra.mxu0 %v84
    %137 = vmatprep.subr.mxu0 0.0
    %138 = vmatpush1.msra.mxu0 %v85
    %139 = vmatprep.subr.mxu0 0.0
    %140 = vmatpush1.msra.mxu0 %v86
    %141 = vmatprep.subr.mxu0 0.0
    %142 = vmatpush1.msra.mxu0 %v87
    %143 = vmatprep.subr.mxu0 0.0
    %144 = vmatpush1.msra.mxu0 %v88
    %145 = vmatprep.subr.mxu0 0.0
    %146 = vmatpush1.msra.mxu0 %v89
    %147 = vmatprep.subr.mxu0 0.0
    %148 = vmatpush1.msra.mxu0 %v90
    %149 = vmatprep.subr.mxu0 0.0
    %150 = vmatpush1.msra.mxu0 %v91
    %151 = vmatprep.subr.mxu0 0.0
    %152 = vmatpush1.msra.mxu0 0.0
    %153 = vmatprep.subr.mxu0 0.0
    %154 = vmatpush1.msra.mxu0 0.0
    %155 = vmatprep.subr.mxu0 0.0
    %156 = vmatpush1.msra.mxu0 0.0
    %157 = vmatprep.subr.mxu0 0.0
    %158 = vmatpush1.msra.mxu0 0.0
    %159 = vmatprep.subr.mxu0 0.0
    %160 = vmatpush1.msra.mxu0 0.0
    %161 = vmatprep.subr.mxu0 0.0
    %162 = vmatpush1.msra.mxu0 0.0
    %163 = vmatprep.subr.mxu0 0.0
    %164 = vmatpush1.msra.mxu0 0.0
    %165 = vmatprep.subr.mxu0 0.0
    %166 = vmatpush1.msra.mxu0 0.0
    %167 = vmatprep.mubr.f32.mxu0 %v101
    %168 = vmatmul.mubr.f32.gmra.mrb[0].mxu0 %v66
    %v169 = vpop.f32.mrb[0].mxu0
    %v170 = vadd.f32 %v97, %v169
    %v171 = vpop.f32.mrb[0].mxu0
    %172 = vdwg.mxu0
    %v173 = vld [vmem:[%s3] sm:$0xff]
    %v174 = vld [vmem:[%s4] sm:$0xff]
    %v175 = vld [vmem:[%s4 + $0x8] sm:$0xff]
    %v176 = vld [vmem:[%s4 + $0x10] sm:$0xff]
    %v177 = vld [vmem:[%s4 + $0x18] sm:$0xff]
    %vm178 = vcmask 261120
    %v180 = vsel %vm178, %v173, 0
    %182 = vmatprep.subr.mxu0 0.0
    %183 = vmatpush1.msra.mxu0 %v174
    %184 = vmatprep.subr.mxu0 0.0
    %185 = vmatpush1.msra.mxu0 %v175
    %186 = vmatprep.subr.mxu0 0.0
    %187 = vmatpush1.msra.mxu0 %v176
    %188 = vmatprep.subr.mxu0 0.0
    %189 = vmatpush1.msra.mxu0 %v177
    %190 = vmatprep.subr.mxu0 0.0
    %191 = vmatpush1.msra.mxu0 0.0
    %192 = vmatprep.subr.mxu0 0.0
    %193 = vmatpush1.msra.mxu0 0.0
    %194 = vmatprep.subr.mxu0 0.0
    %195 = vmatpush1.msra.mxu0 0.0
    %196 = vmatprep.subr.mxu0 0.0
    %197 = vmatpush1.msra.mxu0 0.0
    %198 = vmatprep.subr.mxu0 0.0
    %199 = vmatpush1.msra.mxu0 0.0
    %200 = vmatprep.subr.mxu0 0.0
    %201 = vmatpush1.msra.mxu0 0.0
    %202 = vmatprep.subr.mxu0 0.0
    %203 = vmatpush1.msra.mxu0 0.0
    %204 = vmatprep.subr.mxu0 0.0
    %205 = vmatpush1.msra.mxu0 0.0
    %206 = vmatprep.subr.mxu0 0.0
    %207 = vmatpush1.msra.mxu0 0.0
    %208 = vmatprep.subr.mxu0 0.0
    %209 = vmatpush1.msra.mxu0 0.0
    %210 = vmatprep.subr.mxu0 0.0
    %211 = vmatpush1.msra.mxu0 0.0
    %212 = vmatprep.subr.mxu0 0.0
    %213 = vmatpush1.msra.mxu0 0.0
    %214 = vmatprep.subr.mxu0 0.0
    %215 = vmatpush1.msra.mxu0 0.0
    %216 = vmatprep.subr.mxu0 0.0
    %217 = vmatpush1.msra.mxu0 0.0
    %218 = vmatprep.subr.mxu0 0.0
    %219 = vmatpush1.msra.mxu0 0.0
    %220 = vmatprep.subr.mxu0 0.0
    %221 = vmatpush1.msra.mxu0 0.0
    %222 = vmatprep.subr.mxu0 0.0
    %223 = vmatpush1.msra.mxu0 0.0
    %224 = vmatprep.subr.mxu0 0.0
    %225 = vmatpush1.msra.mxu0 0.0
    %226 = vmatprep.subr.mxu0 0.0
    %227 = vmatpush1.msra.mxu0 0.0
    %228 = vmatprep.subr.mxu0 0.0
    %229 = vmatpush1.msra.mxu0 0.0
    %230 = vmatprep.subr.mxu0 0.0
    %231 = vmatpush1.msra.mxu0 0.0
    %232 = vmatprep.subr.mxu0 0.0
    %233 = vmatpush1.msra.mxu0 0.0
    %234 = vmatprep.subr.mxu0 0.0
    %235 = vmatpush1.msra.mxu0 0.0
    %236 = vmatprep.subr.mxu0 0.0
    %237 = vmatpush1.msra.mxu0 0.0
    %238 = vmatprep.subr.mxu0 0.0
    %239 = vmatpush1.msra.mxu0 0.0
    %240 = vmatprep.subr.mxu0 0.0
    %241 = vmatpush1.msra.mxu0 0.0
    %242 = vmatprep.subr.mxu0 0.0
    %243 = vmatpush1.msra.mxu0 0.0
    %244 = vmatprep.subr.mxu0 0.0
    %245 = vmatpush1.msra.mxu0 0.0
    %246 = vmatprep.mubr.f32.mxu0 0.0
    %247 = vmatmul.mubr.f32.gmra.mrb[0].mxu0 %v180
    %v248 = vpop.f32.mrb[0].mxu0
    %v249 = vadd.f32 0.0, %v248
    %v250 = vpop.f32.mrb[0].mxu0
    %251 = vmatprep.mubr.f32.mxu0 0.0
    %252 = vmatmul.mubr.f32.gmra.mrb[0].mxu0 %v180
    %v253 = vpop.f32.mrb[0].mxu0
    %v254 = vadd.f32 0.0, %v253
    %v255 = vpop.f32.mrb[0].mxu0
    %256 = vdwg.mxu0
    %v257 = vld [vmem:[%s5] sm:$0xff]
    %v258 = vld [vmem:[%s5 + $0x8] sm:$0xff]
    %v259 = vld [vmem:[%s5 + $0x10] sm:$0xff]
    %v260 = vld [vmem:[%s5 + $0x18] sm:$0xff]
    %v262 = vsel %vm178, %v170, 0
    %264 = vmatprep.subr.mxu0 0.0
    %265 = vmatpush1.msra.mxu0 %v257
    %266 = vmatprep.subr.mxu0 0.0
    %267 = vmatpush1.msra.mxu0 %v258
    %268 = vmatprep.subr.mxu0 0.0
    %269 = vmatpush1.msra.mxu0 %v259
    %270 = vmatprep.subr.mxu0 0.0
    %271 = vmatpush1.msra.mxu0 %v260
    %272 = vmatprep.subr.mxu0 0.0
    %273 = vmatpush1.msra.mxu0 0.0
    %274 = vmatprep.subr.mxu0 0.0
    %275 = vmatpush1.msra.mxu0 0.0
    %276 = vmatprep.subr.mxu0 0.0
    %277 = vmatpush1.msra.mxu0 0.0
    %278 = vmatprep.subr.mxu0 0.0
    %279 = vmatpush1.msra.mxu0 0.0
    %280 = vmatprep.subr.mxu0 0.0
    %281 = vmatpush1.msra.mxu0 0.0
    %282 = vmatprep.subr.mxu0 0.0
    %283 = vmatpush1.msra.mxu0 0.0
    %284 = vmatprep.subr.mxu0 0.0
    %285 = vmatpush1.msra.mxu0 0.0
    %286 = vmatprep.subr.mxu0 0.0
    %287 = vmatpush1.msra.mxu0 0.0
    %288 = vmatprep.subr.mxu0 0.0
    %289 = vmatpush1.msra.mxu0 0.0
    %290 = vmatprep.subr.mxu0 0.0
    %291 = vmatpush1.msra.mxu0 0.0
    %292 = vmatprep.subr.mxu0 0.0
    %293 = vmatpush1.msra.mxu0 0.0
    %294 = vmatprep.subr.mxu0 0.0
    %295 = vmatpush1.msra.mxu0 0.0
    %296 = vmatprep.subr.mxu0 0.0
    %297 = vmatpush1.msra.mxu0 0.0
    %298 = vmatprep.subr.mxu0 0.0
    %299 = vmatpush1.msra.mxu0 0.0
    %300 = vmatprep.subr.mxu0 0.0
    %301 = vmatpush1.msra.mxu0 0.0
    %302 = vmatprep.subr.mxu0 0.0
    %303 = vmatpush1.msra.mxu0 0.0
    %304 = vmatprep.subr.mxu0 0.0
    %305 = vmatpush1.msra.mxu0 0.0
    %306 = vmatprep.subr.mxu0 0.0
    %307 = vmatpush1.msra.mxu0 0.0
    %308 = vmatprep.subr.mxu0 0.0
    %309 = vmatpush1.msra.mxu0 0.0
    %310 = vmatprep.subr.mxu0 0.0
    %311 = vmatpush1.msra.mxu0 0.0
    %312 = vmatprep.subr.mxu0 0.0
    %313 = vmatpush1.msra.mxu0 0.0
    %314 = vmatprep.subr.mxu0 0.0
    %315 = vmatpush1.msra.mxu0 0.0
    %316 = vmatprep.subr.mxu0 0.0
    %317 = vmatpush1.msra.mxu0 0.0
    %318 = vmatprep.subr.mxu0 0.0
    %319 = vmatpush1.msra.mxu0 0.0
    %320 = vmatprep.subr.mxu0 0.0
    %321 = vmatpush1.msra.mxu0 0.0
    %322 = vmatprep.subr.mxu0 0.0
    %323 = vmatpush1.msra.mxu0 0.0
    %324 = vmatprep.subr.mxu0 0.0
    %325 = vmatpush1.msra.mxu0 0.0
    %326 = vmatprep.subr.mxu0 0.0
    %327 = vmatpush1.msra.mxu0 0.0
    %328 = vmatprep.mubr.f32.mxu0 0.0
    %329 = vmatmul.mubr.f32.gmra.mrb[0].mxu0 %v262
    %v330 = vpop.f32.mrb[0].mxu0
    %v331 = vadd.f32 0.0, %v330
    %v332 = vpop.f32.mrb[0].mxu0
    %333 = vdwg.mxu0
    %v335 = vsel %vm178, %v249, 0
    %v338 = vsel %vm178, %v254, 0
    %v341 = vsel %vm178, %v331, 0
    %343 = vmatprep.subr.mxu0 0.0
    %344 = vmatpush1.xpose.msra.mxu0 %v341
    %345 = vmatprep.subr.mxu0 0.0
    %346 = vmatpush1.xpose.msra.mxu0 0.0
    %347 = vmatprep.subr.mxu0 0.0
    %348 = vmatpush1.xpose.msra.mxu0 0.0
    %349 = vmatprep.subr.mxu0 0.0
    %350 = vmatpush1.xpose.msra.mxu0 0.0
    %351 = vmatprep.subr.mxu0 0.0
    %352 = vmatpush1.xpose.msra.mxu0 0.0
    %353 = vmatprep.subr.mxu0 0.0
    %354 = vmatpush1.xpose.msra.mxu0 0.0
    %355 = vmatprep.subr.mxu0 0.0
    %356 = vmatpush1.xpose.msra.mxu0 0.0
    %357 = vmatprep.subr.mxu0 0.0
    %358 = vmatpush1.xpose.msra.mxu0 0.0
    %359 = vmatprep.subr.mxu0 0.0
    %360 = vmatpush1.xpose.msra.mxu0 0.0
    %361 = vmatprep.subr.mxu0 0.0
    %362 = vmatpush1.xpose.msra.mxu0 0.0
    %363 = vmatprep.subr.mxu0 0.0
    %364 = vmatpush1.xpose.msra.mxu0 0.0
    %365 = vmatprep.subr.mxu0 0.0
    %366 = vmatpush1.xpose.msra.mxu0 0.0
    %367 = vmatprep.subr.mxu0 0.0
    %368 = vmatpush1.xpose.msra.mxu0 0.0
    %369 = vmatprep.subr.mxu0 0.0
    %370 = vmatpush1.xpose.msra.mxu0 0.0
    %371 = vmatprep.subr.mxu0 0.0
    %372 = vmatpush1.xpose.msra.mxu0 0.0
    %373 = vmatprep.subr.mxu0 0.0
    %374 = vmatpush1.xpose.msra.mxu0 0.0
    %375 = vmatprep.subr.mxu0 0.0
    %376 = vmatpush1.xpose.msra.mxu0 0.0
    %377 = vmatprep.subr.mxu0 0.0
    %378 = vmatpush1.xpose.msra.mxu0 0.0
    %379 = vmatprep.subr.mxu0 0.0
    %380 = vmatpush1.xpose.msra.mxu0 0.0
    %381 = vmatprep.subr.mxu0 0.0
    %382 = vmatpush1.xpose.msra.mxu0 0.0
    %383 = vmatprep.subr.mxu0 0.0
    %384 = vmatpush1.xpose.msra.mxu0 0.0
    %385 = vmatprep.subr.mxu0 0.0
    %386 = vmatpush1.xpose.msra.mxu0 0.0
    %387 = vmatprep.subr.mxu0 0.0
    %388 = vmatpush1.xpose.msra.mxu0 0.0
    %389 = vmatprep.subr.mxu0 0.0
    %390 = vmatpush1.xpose.msra.mxu0 0.0
    %391 = vmatprep.subr.mxu0 0.0
    %392 = vmatpush1.xpose.msra.mxu0 0.0
    %393 = vmatprep.subr.mxu0 0.0
    %394 = vmatpush1.xpose.msra.mxu0 0.0
    %395 = vmatprep.subr.mxu0 0.0
    %396 = vmatpush1.xpose.msra.mxu0 0.0
    %397 = vmatprep.subr.mxu0 0.0
    %398 = vmatpush1.xpose.msra.mxu0 0.0
    %399 = vmatprep.subr.mxu0 0.0
    %400 = vmatpush1.xpose.msra.mxu0 0.0
    %401 = vmatprep.subr.mxu0 0.0
    %402 = vmatpush1.xpose.msra.mxu0 0.0
    %403 = vmatprep.subr.mxu0 0.0
    %404 = vmatpush1.xpose.msra.mxu0 0.0
    %405 = vmatprep.subr.mxu0 0.0
    %406 = vmatpush1.xpose.msra.mxu0 0.0
    %407 = vmatprep.mubr.f32.mxu0 0.0
    %408 = vmatmul.mubr.f32.gmra.mrb[0].mxu0 %v335
    %v409 = vpop.f32.mrb[0].mxu0
    %v410 = vadd.f32 0.0, %v409
    %v411 = vpop.f32.mrb[0].mxu0
    %412 = vmatprep.mubr.f32.mxu0 0.0
    %413 = vmatmul.mubr.f32.gmra.mrb[0].mxu0 %v338
    %v414 = vpop.f32.mrb[0].mxu0
    %v415 = vadd.f32 0.0, %v414
    %v416 = vpop.f32.mrb[0].mxu0
    %417 = vdwg.mxu0
    %v418 = vmul.f32 %v410, 0.17677669
    %v419 = vmul.f32 %v415, 0.17677669
    %v420 = vld [vmem:[%s7] sm:$0xff]
    %v421 = vld [vmem:[%s7 + $0x8] sm:$0xff]
    %v422 = vadd.f32 %v418, %v420
    %v423 = vadd.f32 %v419, %v421
    %vm424 = vcmask 64512
    %v425 = vsel %vm424, %v422, -inf
    %426 = vmax.xlane.f32.xlu0 %v425
    %v427 = vpop.xlane.xlu0 %426
    %v428 = vsel %vm424, %v423, -inf
    %429 = vmax.xlane.f32.xlu0 %v428
    %v430 = vpop.xlane.xlu0 %429
    %v431 = vsub.f32 %v422, %v427
    %v432 = vsub.f32 %v423, %v430
    %v433 = vmul.f32 %v431, 1.442695
    %v434 = vpow.pop %v433
    %v435 = vmul.f32 %v432, 1.442695
    %v436 = vpow.pop %v435
    %v437 = vsel %vm424, %v434, 0.0
    %438 = vadd.xlane.f32.xlu0 %v437
    %v439 = vpop.xlane.xlu0 %438
    %v440 = vsel %vm424, %v436, 0.0
    %441 = vadd.xlane.f32.xlu0 %v440
    %v442 = vpop.xlane.xlu0 %441
    %v443 = vrcp.pop %v439
    %v444 = vrcp.pop %v442
    %v445 = vmul.f32 %v434, %v443
    %v446 = vmul.f32 %v436, %v444
    %447 = vrot.lane.b32.xlu0 %v331, 96
    %v448 = vpop.permute.xlu0 %447
    %v451 = vsel %vm424, %v445, 0
    %v454 = vsel %vm424, %v446, 0
    %456 = vmatprep.subr.mxu0 0.0
    %457 = vmatpush1.msra.mxu0 %v448
    %458 = vmatprep.subr.mxu0 0.0
    %459 = vmatpush1.msra.mxu0 0.0
    %460 = vmatprep.subr.mxu0 0.0
    %461 = vmatpush1.msra.mxu0 0.0
    %462 = vmatprep.subr.mxu0 0.0
    %463 = vmatpush1.msra.mxu0 0.0
    %464 = vmatprep.subr.mxu0 0.0
    %465 = vmatpush1.msra.mxu0 0.0
    %466 = vmatprep.subr.mxu0 0.0
    %467 = vmatpush1.msra.mxu0 0.0
    %468 = vmatprep.subr.mxu0 0.0
    %469 = vmatpush1.msra.mxu0 0.0
    %470 = vmatprep.subr.mxu0 0.0
    %471 = vmatpush1.msra.mxu0 0.0
    %472 = vmatprep.subr.mxu0 0.0
    %473 = vmatpush1.msra.mxu0 0.0
    %474 = vmatprep.subr.mxu0 0.0
    %475 = vmatpush1.msra.mxu0 0.0
    %476 = vmatprep.subr.mxu0 0.0
    %477 = vmatpush1.msra.mxu0 0.0
    %478 = vmatprep.subr.mxu0 0.0
    %479 = vmatpush1.msra.mxu0 0.0
    %480 = vmatprep.subr.mxu0 0.0
    %481 = vmatpush1.msra.mxu0 0.0
    %482 = vmatprep.subr.mxu0 0.0
    %483 = vmatpush1.msra.mxu0 0.0
    %484 = vmatprep.subr.mxu0 0.0
    %485 = vmatpush1.msra.mxu0 0.0
    %486 = vmatprep.subr.mxu0 0.0
    %487 = vmatpush1.msra.mxu0 0.0
    %488 = vmatprep.subr.mxu0 0.0
    %489 = vmatpush1.msra.mxu0 0.0
    %490 = vmatprep.subr.mxu0 0.0
    %491 = vmatpush1.msra.mxu0 0.0
    %492 = vmatprep.subr.mxu0 0.0
    %493 = vmatpush1.msra.mxu0 0.0
    %494 = vmatprep.subr.mxu0 0.0
    %495 = vmatpush1.msra.mxu0 0.0
    %496 = vmatprep.subr.mxu0 0.0
    %497 = vmatpush1.msra.mxu0 0.0
    %498 = vmatprep.subr.mxu0 0.0
    %499 = vmatpush1.msra.mxu0 0.0
    %500 = vmatprep.subr.mxu0 0.0
    %501 = vmatpush1.msra.mxu0 0.0
    %502 = vmatprep.subr.mxu0 0.0
    %503 = vmatpush1.msra.mxu0 0.0
    %504 = vmatprep.subr.mxu0 0.0
    %505 = vmatpush1.msra.mxu0 0.0
    %506 = vmatprep.subr.mxu0 0.0
    %507 = vmatpush1.msra.mxu0 0.0
    %508 = vmatprep.subr.mxu0 0.0
    %509 = vmatpush1.msra.mxu0 0.0
    %510 = vmatprep.subr.mxu0 0.0
    %511 = vmatpush1.msra.mxu0 0.0
    %512 = vmatprep.subr.mxu0 0.0
    %513 = vmatpush1.msra.mxu0 0.0
    %514 = vmatprep.subr.mxu0 0.0
    %515 = vmatpush1.msra.mxu0 0.0
    %516 = vmatprep.subr.mxu0 0.0
    %517 = vmatpush1.msra.mxu0 0.0
    %518 = vmatprep.subr.mxu0 0.0
    %519 = vmatpush1.msra.mxu0 0.0
    %520 = vmatprep.mubr.f32.mxu0 0.0
    %521 = vmatmul.mubr.f32.gmra.mrb[0].mxu0 %v451
    %v522 = vpop.f32.mrb[0].mxu0
    %v523 = vadd.f32 0.0, %v522
    %v524 = vpop.f32.mrb[0].mxu0
    %525 = vmatprep.mubr.f32.mxu0 0.0
    %526 = vmatmul.mubr.f32.gmra.mrb[0].mxu0 %v454
    %v527 = vpop.f32.mrb[0].mxu0
    %v528 = vadd.f32 0.0, %v527
    %v529 = vpop.f32.mrb[0].mxu0
    %530 = vdwg.mxu0
    %v531 = vld [vmem:[%s6] sm:$0xff]
    %v532 = vld [vmem:[%s6 + $0x8] sm:$0xff]
    %v533 = vld [vmem:[%s6 + $0x10] sm:$0xff]
    %v534 = vld [vmem:[%s6 + $0x18] sm:$0xff]
    %v536 = vsel %vm178, %v523, 0
    %v539 = vsel %vm178, %v528, 0
    %541 = vmatprep.subr.mxu0 0.0
    %542 = vmatpush1.msra.mxu0 %v531
    %543 = vmatprep.subr.mxu0 0.0
    %544 = vmatpush1.msra.mxu0 %v532
    %545 = vmatprep.subr.mxu0 0.0
    %546 = vmatpush1.msra.mxu0 %v533
    %547 = vmatprep.subr.mxu0 0.0
    %548 = vmatpush1.msra.mxu0 %v534
    %549 = vmatprep.subr.mxu0 0.0
    %550 = vmatpush1.msra.mxu0 0.0
    %551 = vmatprep.subr.mxu0 0.0
    %552 = vmatpush1.msra.mxu0 0.0
    %553 = vmatprep.subr.mxu0 0.0
    %554 = vmatpush1.msra.mxu0 0.0
    %555 = vmatprep.subr.mxu0 0.0
    %556 = vmatpush1.msra.mxu0 0.0
    %557 = vmatprep.subr.mxu0 0.0
    %558 = vmatpush1.msra.mxu0 0.0
    %559 = vmatprep.subr.mxu0 0.0
    %560 = vmatpush1.msra.mxu0 0.0
    %561 = vmatprep.subr.mxu0 0.0
    %562 = vmatpush1.msra.mxu0 0.0
    %563 = vmatprep.subr.mxu0 0.0
    %564 = vmatpush1.msra.mxu0 0.0
    %565 = vmatprep.subr.mxu0 0.0
    %566 = vmatpush1.msra.mxu0 0.0
    %567 = vmatprep.subr.mxu0 0.0
    %568 = vmatpush1.msra.mxu0 0.0
    %569 = vmatprep.subr.mxu0 0.0
    %570 = vmatpush1.msra.mxu0 0.0
    %571 = vmatprep.subr.mxu0 0.0
    %572 = vmatpush1.msra.mxu0 0.0
    %573 = vmatprep.subr.mxu0 0.0
    %574 = vmatpush1.msra.mxu0 0.0
    %575 = vmatprep.subr.mxu0 0.0
    %576 = vmatpush1.msra.mxu0 0.0
    %577 = vmatprep.subr.mxu0 0.0
    %578 = vmatpush1.msra.mxu0 0.0
    %579 = vmatprep.subr.mxu0 0.0
    %580 = vmatpush1.msra.mxu0 0.0
    %581 = vmatprep.subr.mxu0 0.0
    %582 = vmatpush1.msra.mxu0 0.0
    %583 = vmatprep.subr.mxu0 0.0
    %584 = vmatpush1.msra.mxu0 0.0
    %585 = vmatprep.subr.mxu0 0.0
    %586 = vmatpush1.msra.mxu0 0.0
    %587 = vmatprep.subr.mxu0 0.0
    %588 = vmatpush1.msra.mxu0 0.0
    %589 = vmatprep.subr.mxu0 0.0
    %590 = vmatpush1.msra.mxu0 0.0
    %591 = vmatprep.subr.mxu0 0.0
    %592 = vmatpush1.msra.mxu0 0.0
    %593 = vmatprep.subr.mxu0 0.0
    %594 = vmatpush1.msra.mxu0 0.0
    %595 = vmatprep.subr.mxu0 0.0
    %596 = vmatpush1.msra.mxu0 0.0
    %597 = vmatprep.subr.mxu0 0.0
    %598 = vmatpush1.msra.mxu0 0.0
    %599 = vmatprep.subr.mxu0 0.0
    %600 = vmatpush1.msra.mxu0 0.0
    %601 = vmatprep.subr.mxu0 0.0
    %602 = vmatpush1.msra.mxu0 0.0
    %603 = vmatprep.subr.mxu0 0.0
    %604 = vmatpush1.msra.mxu0 0.0
    %605 = vmatprep.mubr.f32.mxu0 0.0
    %606 = vmatmul.mubr.f32.gmra.mrb[0].mxu0 %v536
    %v607 = vpop.f32.mrb[0].mxu0
    %v608 = vadd.f32 0.0, %v607
    %v609 = vpop.f32.mrb[0].mxu0
    %610 = vmatprep.mubr.f32.mxu0 0.0
    %611 = vmatmul.mubr.f32.gmra.mrb[0].mxu0 %v539
    %v612 = vpop.f32.mrb[0].mxu0
    %v613 = vadd.f32 0.0, %v612
    %v614 = vpop.f32.mrb[0].mxu0
    %615 = vdwg.mxu0
    %v616 = vadd.f32 %v173, %v608
    %v617 = vadd.f32 %v173, %v613
    %v618 = vld [vmem:[%s8] sm:$0x1]
    %v619 = vld [vmem:[%s9] sm:$0x1]
    %v620 = vsel %vm178, %v616, 0.0
    %621 = vadd.xlane.f32.xlu0 %v620
    %v622 = vpop.xlane.xlu0 %621
    %v623 = vsel %vm178, %v617, 0.0
    %624 = vadd.xlane.f32.xlu0 %v623
    %v625 = vpop.xlane.xlu0 %624
    %v626 = vrcp.pop 32.0
    %v627 = vmul.f32 %v622, %v626
    %v628 = vmul.f32 %v625, %v626
    %v629 = vsub.f32 %v616, %v627
    %v630 = vsub.f32 %v617, %v628
    %v631 = vmul.f32 %v629, %v629
    %v632 = vmul.f32 %v630, %v630
    %v633 = vsel %vm178, %v631, 0.0
    %634 = vadd.xlane.f32.xlu0 %v633
    %v635 = vpop.xlane.xlu0 %634
    %v636 = vsel %vm178, %v632, 0.0
    %637 = vadd.xlane.f32.xlu0 %v636
    %v638 = vpop.xlane.xlu0 %637
    %v639 = vmul.f32 %v635, %v626
    %v640 = vmul.f32 %v638, %v626
    %v641 = vadd.f32 %v639, 1e-05
    %v642 = vadd.f32 %v640, 1e-05
    %v643 = vrsqrt.pop %v641
    %v644 = vrsqrt.pop %v642
    %v645 = vmul.f32 %v629, %v643
    %v646 = vmul.f32 %v630, %v644
    %v648 = vlaneseq
    %v649 = vshrl.u32 %v648, 7
    %v650 = vsub.s32 0, %v649
    %v651 = vrot.slane %v618, %v650
    %v653 = vmul.f32 %v645, %v651
    %v654 = vmul.f32 %v646, %v651
    %v656 = vlaneseq
    %v657 = vshrl.u32 %v656, 7
    %v658 = vsub.s32 0, %v657
    %v659 = vrot.slane %v619, %v658
    %v661 = vadd.f32 %v653, %v659
    %v662 = vadd.f32 %v654, %v659
    %v663 = vld [vmem:[%s10] sm:$0xff]
    %v664 = vld [vmem:[%s10 + $0x8] sm:$0xff]
    %v665 = vld [vmem:[%s10 + $0x10] sm:$0xff]
    %v666 = vld [vmem:[%s10 + $0x18] sm:$0xff]
    %v667 = vld [vmem:[%s11] sm:$0x1]
    %v669 = vlaneseq
    %v670 = vshrl.u32 %v669, 7
    %v671 = vsub.s32 0, %v670
    %v672 = vrot.slane %v667, %v671
    %v675 = vsel %vm178, %v661, 0
    %v678 = vsel %vm178, %v662, 0
    %680 = vmatprep.subr.mxu0 0.0
    %681 = vmatpush1.msra.mxu0 %v663
    %682 = vmatprep.subr.mxu0 0.0
    %683 = vmatpush1.msra.mxu0 %v664
    %684 = vmatprep.subr.mxu0 0.0
    %685 = vmatpush1.msra.mxu0 %v665
    %686 = vmatprep.subr.mxu0 0.0
    %687 = vmatpush1.msra.mxu0 %v666
    %688 = vmatprep.subr.mxu0 0.0
    %689 = vmatpush1.msra.mxu0 0.0
    %690 = vmatprep.subr.mxu0 0.0
    %691 = vmatpush1.msra.mxu0 0.0
    %692 = vmatprep.subr.mxu0 0.0
    %693 = vmatpush1.msra.mxu0 0.0
    %694 = vmatprep.subr.mxu0 0.0
    %695 = vmatpush1.msra.mxu0 0.0
    %696 = vmatprep.subr.mxu0 0.0
    %697 = vmatpush1.msra.mxu0 0.0
    %698 = vmatprep.subr.mxu0 0.0
    %699 = vmatpush1.msra.mxu0 0.0
    %700 = vmatprep.subr.mxu0 0.0
    %701 = vmatpush1.msra.mxu0 0.0
    %702 = vmatprep.subr.mxu0 0.0
    %703 = vmatpush1.msra.mxu0 0.0
    %704 = vmatprep.subr.mxu0 0.0
    %705 = vmatpush1.msra.mxu0 0.0
    %706 = vmatprep.subr.mxu0 0.0
    %707 = vmatpush1.msra.mxu0 0.0
    %708 = vmatprep.subr.mxu0 0.0
    %709 = vmatpush1.msra.mxu0 0.0
    %710 = vmatprep.subr.mxu0 0.0
    %711 = vmatpush1.msra.mxu0 0.0
    %712 = vmatprep.subr.mxu0 0.0
    %713 = vmatpush1.msra.mxu0 0.0
    %714 = vmatprep.subr.mxu0 0.0
    %715 = vmatpush1.msra.mxu0 0.0
    %716 = vmatprep.subr.mxu0 0.0
    %717 = vmatpush1.msra.mxu0 0.0
    %718 = vmatprep.subr.mxu0 0.0
    %719 = vmatpush1.msra.mxu0 0.0
    %720 = vmatprep.subr.mxu0 0.0
    %721 = vmatpush1.msra.mxu0 0.0
    %722 = vmatprep.subr.mxu0 0.0
    %723 = vmatpush1.msra.mxu0 0.0
    %724 = vmatprep.subr.mxu0 0.0
    %725 = vmatpush1.msra.mxu0 0.0
    %726 = vmatprep.subr.mxu0 0.0
    %727 = vmatpush1.msra.mxu0 0.0
    %728 = vmatprep.subr.mxu0 0.0
    %729 = vmatpush1.msra.mxu0 0.0
    %730 = vmatprep.subr.mxu0 0.0
    %731 = vmatpush1.msra.mxu0 0.0
    %732 = vmatprep.subr.mxu0 0.0
    %733 = vmatpush1.msra.mxu0 0.0
    %734 = vmatprep.subr.mxu0 0.0
    %735 = vmatpush1.msra.mxu0 0.0
    %736 = vmatprep.subr.mxu0 0.0
    %737 = vmatpush1.msra.mxu0 0.0
    %738 = vmatprep.subr.mxu0 0.0
    %739 = vmatpush1.msra.mxu0 0.0
    %740 = vmatprep.subr.mxu0 0.0
    %741 = vmatpush1.msra.mxu0 0.0
    %742 = vmatprep.subr.mxu0 0.0
    %743 = vmatpush1.msra.mxu0 0.0
    %744 = vmatprep.mubr.f32.mxu0 0.0
    %745 = vmatmul.mubr.f32.gmra.mrb[0].mxu0 %v675
    %v746 = vpop.f32.mrb[0].mxu0
    %v747 = vadd.f32 %v672, %v746
    %v748 = vpop.f32.mrb[0].mxu0
    %749 = vmatprep.mubr.f32.mxu0 0.0
    %750 = vmatmul.mubr.f32.gmra.mrb[0].mxu0 %v678
    %v751 = vpop.f32.mrb[0].mxu0
    %v752 = vadd.f32 %v672, %v751
    %v753 = vpop.f32.mrb[0].mxu0
    %754 = vdwg.mxu0
    %v755 = vmul.f32 %v747, %v747
    %v756 = vmul.f32 %v752, %v752
    %v757 = vmul.f32 %v747, %v755
    %v758 = vmul.f32 %v752, %v756
    %v759 = vmul.f32 %v757, 0.044715
    %v760 = vmul.f32 %v758, 0.044715
    %v761 = vadd.f32 %v747, %v759
    %v762 = vadd.f32 %v752, %v760
    %v763 = vmul.f32 %v761, 0.7978846
    %v764 = vmul.f32 %v762, 0.7978846
    %v765 = vtanh.pop %v763
    %v766 = vtanh.pop %v764
    %v767 = vadd.f32 %v765, 1.0
    %v768 = vadd.f32 %v766, 1.0
    %v769 = vmul.f32 %v767, 0.5
    %v770 = vmul.f32 %v768, 0.5
    %v771 = vmul.f32 %v747, %v769
    %v772 = vmul.f32 %v752, %v770
    %v773 = vld [vmem:[%s12] sm:$0xff]
    %v774 = vld [vmem:[%s12 + $0x8] sm:$0xff]
    %v775 = vld [vmem:[%s12 + $0x10] sm:$0xff]
    %v776 = vld [vmem:[%s12 + $0x18] sm:$0xff]
    %v777 = vld [vmem:[%s12 + $0x20] sm:$0xff]
    %v778 = vld [vmem:[%s12 + $0x28] sm:$0xff]
    %v779 = vld [vmem:[%s12 + $0x30] sm:$0xff]
    %v780 = vld [vmem:[%s12 + $0x38] sm:$0xff]
    %v781 = vld [vmem:[%s13] sm:$0x1]
    %v783 = vlaneseq
    %v784 = vshrl.u32 %v783, 7
    %v785 = vsub.s32 0, %v784
    %v786 = vrot.slane %v781, %v785
    %v789 = vsel %vm99, %v771, 0
    %v792 = vsel %vm99, %v772, 0
    %794 = vmatprep.subr.mxu0 0.0
    %795 = vmatpush1.msra.mxu0 %v773
    %796 = vmatprep.subr.mxu0 0.0
    %797 = vmatpush1.msra.mxu0 %v774
    %798 = vmatprep.subr.mxu0 0.0
    %799 = vmatpush1.msra.mxu0 %v775
    %800 = vmatprep.subr.mxu0 0.0
    %801 = vmatpush1.msra.mxu0 %v776
    %802 = vmatprep.subr.mxu0 0.0
    %803 = vmatpush1.msra.mxu0 %v777
    %804 = vmatprep.subr.mxu0 0.0
    %805 = vmatpush1.msra.mxu0 %v778
    %806 = vmatprep.subr.mxu0 0.0
    %807 = vmatpush1.msra.mxu0 %v779
    %808 = vmatprep.subr.mxu0 0.0
    %809 = vmatpush1.msra.mxu0 %v780
    %810 = vmatprep.subr.mxu0 0.0
    %811 = vmatpush1.msra.mxu0 0.0
    %812 = vmatprep.subr.mxu0 0.0
    %813 = vmatpush1.msra.mxu0 0.0
    %814 = vmatprep.subr.mxu0 0.0
    %815 = vmatpush1.msra.mxu0 0.0
    %816 = vmatprep.subr.mxu0 0.0
    %817 = vmatpush1.msra.mxu0 0.0
    %818 = vmatprep.subr.mxu0 0.0
    %819 = vmatpush1.msra.mxu0 0.0
    %820 = vmatprep.subr.mxu0 0.0
    %821 = vmatpush1.msra.mxu0 0.0
    %822 = vmatprep.subr.mxu0 0.0
    %823 = vmatpush1.msra.mxu0 0.0
    %824 = vmatprep.subr.mxu0 0.0
    %825 = vmatpush1.msra.mxu0 0.0
    %826 = vmatprep.subr.mxu0 0.0
    %827 = vmatpush1.msra.mxu0 0.0
    %828 = vmatprep.subr.mxu0 0.0
    %829 = vmatpush1.msra.mxu0 0.0
    %830 = vmatprep.subr.mxu0 0.0
    %831 = vmatpush1.msra.mxu0 0.0
    %832 = vmatprep.subr.mxu0 0.0
    %833 = vmatpush1.msra.mxu0 0.0
    %834 = vmatprep.subr.mxu0 0.0
    %835 = vmatpush1.msra.mxu0 0.0
    %836 = vmatprep.subr.mxu0 0.0
    %837 = vmatpush1.msra.mxu0 0.0
    %838 = vmatprep.subr.mxu0 0.0
    %839 = vmatpush1.msra.mxu0 0.0
    %840 = vmatprep.subr.mxu0 0.0
    %841 = vmatpush1.msra.mxu0 0.0
    %842 = vmatprep.subr.mxu0 0.0
    %843 = vmatpush1.msra.mxu0 0.0
    %844 = vmatprep.subr.mxu0 0.0
    %845 = vmatpush1.msra.mxu0 0.0
    %846 = vmatprep.subr.mxu0 0.0
    %847 = vmatpush1.msra.mxu0 0.0
    %848 = vmatprep.subr.mxu0 0.0
    %849 = vmatpush1.msra.mxu0 0.0
    %850 = vmatprep.subr.mxu0 0.0
    %851 = vmatpush1.msra.mxu0 0.0
    %852 = vmatprep.subr.mxu0 0.0
    %853 = vmatpush1.msra.mxu0 0.0
    %854 = vmatprep.subr.mxu0 0.0
    %855 = vmatpush1.msra.mxu0 0.0
    %856 = vmatprep.subr.mxu0 0.0
    %857 = vmatpush1.msra.mxu0 0.0
    %858 = vmatprep.mubr.f32.mxu0 0.0
    %859 = vmatmul.mubr.f32.gmra.mrb[0].mxu0 %v789
    %v860 = vpop.f32.mrb[0].mxu0
    %v861 = vadd.f32 %v786, %v860
    %v862 = vpop.f32.mrb[0].mxu0
    %863 = vmatprep.mubr.f32.mxu0 0.0
    %864 = vmatmul.mubr.f32.gmra.mrb[0].mxu0 %v792
    %v865 = vpop.f32.mrb[0].mxu0
    %v866 = vadd.f32 %v786, %v865
    %v867 = vpop.f32.mrb[0].mxu0
    %868 = vdwg.mxu0
    %v869 = vadd.f32 %v661, %v861
    %v870 = vadd.f32 %v662, %v866
    %v871 = vld [vmem:[%s14] sm:$0x1]
    %v872 = vld [vmem:[%s15] sm:$0x1]
    %v873 = vsel %vm178, %v869, 0.0
    %874 = vadd.xlane.f32.xlu0 %v873
    %v875 = vpop.xlane.xlu0 %874
    %v876 = vsel %vm178, %v870, 0.0
    %877 = vadd.xlane.f32.xlu0 %v876
    %v878 = vpop.xlane.xlu0 %877
    %v879 = vmul.f32 %v875, %v626
    %v880 = vmul.f32 %v878, %v626
    %v881 = vsub.f32 %v869, %v879
    %v882 = vsub.f32 %v870, %v880
    %v883 = vmul.f32 %v881, %v881
    %v884 = vmul.f32 %v882, %v882
    %v885 = vsel %vm178, %v883, 0.0
    %886 = vadd.xlane.f32.xlu0 %v885
    %v887 = vpop.xlane.xlu0 %886
    %v888 = vsel %vm178, %v884, 0.0
    %889 = vadd.xlane.f32.xlu0 %v888
    %v890 = vpop.xlane.xlu0 %889
    %v891 = vmul.f32 %v887, %v626
    %v892 = vmul.f32 %v890, %v626
    %v893 = vadd.f32 %v891, 1e-05
    %v894 = vadd.f32 %v892, 1e-05
    %v895 = vrsqrt.pop %v893
    %v896 = vrsqrt.pop %v894
    %v897 = vmul.f32 %v881, %v895
    %v898 = vmul.f32 %v882, %v896
    %v900 = vlaneseq
    %v901 = vshrl.u32 %v900, 7
    %v902 = vsub.s32 0, %v901
    %v903 = vrot.slane %v871, %v902
    %v905 = vmul.f32 %v897, %v903
    %v906 = vmul.f32 %v898, %v903
    %v908 = vlaneseq
    %v909 = vshrl.u32 %v908, 7
    %v910 = vsub.s32 0, %v909
    %v911 = vrot.slane %v872, %v910
    %v913 = vadd.f32 %v905, %v911
    %v914 = vadd.f32 %v906, %v911
    %v916 = vrot.slane %v914, 7
    %vm918 = vcmask 1040384
    %v919 = vsel %vm918, %v913, %v916
    %v920 = vld [vmem:[%s16] sm:$0xff]
    %v921 = vld [vmem:[%s16 + $0x8] sm:$0xff]
    %v922 = vld [vmem:[%s16 + $0x10] sm:$0xff]
    %v923 = vld [vmem:[%s16 + $0x18] sm:$0xff]
    %v924 = vld [vmem:[%s17] sm:$0x1]
    %v926 = vlaneseq
    %v927 = vshrl.u32 %v926, 7
    %v928 = vsub.s32 0, %v927
    %v929 = vrot.slane %v924, %v928
    %v932 = vsel %vm178, %v919, 0
    %934 = vmatprep.subr.mxu0 0.0
    %935 = vmatpush1.msra.mxu0 %v920
    %936 = vmatprep.subr.mxu0 0.0
    %937 = vmatpush1.msra.mxu0 %v921
    %938 = vmatprep.subr.mxu0 0.0
    %939 = vmatpush1.msra.mxu0 %v922
    %940 = vmatprep.subr.mxu0 0.0
    %941 = vmatpush1.msra.mxu0 %v923
    %942 = vmatprep.subr.mxu0 0.0
    %943 = vmatpush1.msra.mxu0 0.0
    %944 = vmatprep.subr.mxu0 0.0
    %945 = vmatpush1.msra.mxu0 0.0
    %946 = vmatprep.subr.mxu0 0.0
    %947 = vmatpush1.msra.mxu0 0.0
    %948 = vmatprep.subr.mxu0 0.0
    %949 = vmatpush1.msra.mxu0 0.0
    %950 = vmatprep.subr.mxu0 0.0
    %951 = vmatpush1.msra.mxu0 0.0
    %952 = vmatprep.subr.mxu0 0.0
    %953 = vmatpush1.msra.mxu0 0.0
    %954 = vmatprep.subr.mxu0 0.0
    %955 = vmatpush1.msra.mxu0 0.0
    %956 = vmatprep.subr.mxu0 0.0
    %957 = vmatpush1.msra.mxu0 0.0
    %958 = vmatprep.subr.mxu0 0.0
    %959 = vmatpush1.msra.mxu0 0.0
    %960 = vmatprep.subr.mxu0 0.0
    %961 = vmatpush1.msra.mxu0 0.0
    %962 = vmatprep.subr.mxu0 0.0
    %963 = vmatpush1.msra.mxu0 0.0
    %964 = vmatprep.subr.mxu0 0.0
    %965 = vmatpush1.msra.mxu0 0.0
    %966 = vmatprep.subr.mxu0 0.0
    %967 = vmatpush1.msra.mxu0 0.0
    %968 = vmatprep.subr.mxu0 0.0
    %969 = vmatpush1.msra.mxu0 0.0
    %970 = vmatprep.subr.mxu0 0.0
    %971 = vmatpush1.msra.mxu0 0.0
    %972 = vmatprep.subr.mxu0 0.0
    %973 = vmatpush1.msra.mxu0 0.0
    %974 = vmatprep.subr.mxu0 0.0
    %975 = vmatpush1.msra.mxu0 0.0
    %976 = vmatprep.subr.mxu0 0.0
    %977 = vmatpush1.msra.mxu0 0.0
    %978 = vmatprep.subr.mxu0 0.0
    %979 = vmatpush1.msra.mxu0 0.0
    %980 = vmatprep.subr.mxu0 0.0
    %981 = vmatpush1.msra.mxu0 0.0
    %982 = vmatprep.subr.mxu0 0.0
    %983 = vmatpush1.msra.mxu0 0.0
    %984 = vmatprep.subr.mxu0 0.0
    %985 = vmatpush1.msra.mxu0 0.0
    %986 = vmatprep.subr.mxu0 0.0
    %987 = vmatpush1.msra.mxu0 0.0
    %988 = vmatprep.subr.mxu0 0.0
    %989 = vmatpush1.msra.mxu0 0.0
    %990 = vmatprep.subr.mxu0 0.0
    %991 = vmatpush1.msra.mxu0 0.0
    %992 = vmatprep.subr.mxu0 0.0
    %993 = vmatpush1.msra.mxu0 0.0
    %994 = vmatprep.subr.mxu0 0.0
    %995 = vmatpush1.msra.mxu0 0.0
    %996 = vmatprep.subr.mxu0 0.0
    %997 = vmatpush1.msra.mxu0 0.0
    %998 = vmatprep.mubr.f32.mxu0 0.0
    %999 = vmatmul.mubr.f32.gmra.mrb[0].mxu0 %v932
    %v1000 = vpop.f32.mrb[0].mxu0
    %v1001 = vadd.f32 %v929, %v1000
    %v1002 = vpop.f32.mrb[0].mxu0
    %1003 = vdwg.mxu0
    %v1004 = vmax.f32 %v1001, 0.0
    %v1005 = vld [vmem:[%s18] sm:$0xff]
    %v1006 = vld [vmem:[%s18 + $0x8] sm:$0xff]
    %v1007 = vld [vmem:[%s18 + $0x10] sm:$0xff]
    %v1008 = vld [vmem:[%s18 + $0x18] sm:$0xff]
    %v1009 = vld [vmem:[%s18 + $0x20] sm:$0xff]
    %v1010 = vld [vmem:[%s18 + $0x28] sm:$0xff]
    %v1011 = vld [vmem:[%s18 + $0x30] sm:$0xff]
    %v1012 = vld [vmem:[%s18 + $0x38] sm:$0xff]
    %v1013 = vld [vmem:[%s19] sm:$0x1]
    %v1015 = vlaneseq
    %v1016 = vshrl.u32 %v1015, 7
    %v1017 = vsub.s32 0, %v1016
    %v1018 = vrot.slane %v1013, %v1017
    %v1021 = vsel %vm99, %v1004, 0
    %1023 = vmatprep.subr.mxu0 0.0
    %1024 = vmatpush1.msra.mxu0 %v1005
    %1025 = vmatprep.subr.mxu0 0.0
    %1026 = vmatpush1.msra.mxu0 %v1006
    %1027 = vmatprep.subr.mxu0 0.0
    %1028 = vmatpush1.msra.mxu0 %v1007
    %1029 = vmatprep.subr.mxu0 0.0
    %1030 = vmatpush1.msra.mxu0 %v1008
    %1031 = vmatprep.subr.mxu0 0.0
    %1032 = vmatpush1.msra.mxu0 %v1009
    %1033 = vmatprep.subr.mxu0 0.0
    %1034 = vmatpush1.msra.mxu0 %v1010
    %1035 = vmatprep.subr.mxu0 0.0
    %1036 = vmatpush1.msra.mxu0 %v1011
    %1037 = vmatprep.subr.mxu0 0.0
    %1038 = vmatpush1.msra.mxu0 %v1012
    %1039 = vmatprep.subr.mxu0 0.0
    %1040 = vmatpush1.msra.mxu0 0.0
    %1041 = vmatprep.subr.mxu0 0.0
    %1042 = vmatpush1.msra.mxu0 0.0
    %1043 = vmatprep.subr.mxu0 0.0
    %1044 = vmatpush1.msra.mxu0 0.0
    %1045 = vmatprep.subr.mxu0 0.0
    %1046 = vmatpush1.msra.mxu0 0.0
    %1047 = vmatprep.subr.mxu0 0.0
    %1048 = vmatpush1.msra.mxu0 0.0
    %1049 = vmatprep.subr.mxu0 0.0
    %1050 = vmatpush1.msra.mxu0 0.0
    %1051 = vmatprep.subr.mxu0 0.0
    %1052 = vmatpush1.msra.mxu0 0.0
    %1053 = vmatprep.subr.mxu0 0.0
    %1054 = vmatpush1.msra.mxu0 0.0
    %1055 = vmatprep.subr.mxu0 0.0
    %1056 = vmatpush1.msra.mxu0 0.0
    %1057 = vmatprep.subr.mxu0 0.0
    %1058 = vmatpush1.msra.mxu0 0.0
    %1059 = vmatprep.subr.mxu0 0.0
    %1060 = vmatpush1.msra.mxu0 0.0
    %1061 = vmatprep.subr.mxu0 0.0
    %1062 = vmatpush1.msra.mxu0 0.0
    %1063 = vmatprep.subr.mxu0 0.0
    %1064 = vmatpush1.msra.mxu0 0.0
    %1065 = vmatprep.subr.mxu0 0.0
    %1066 = vmatpush1.msra.mxu0 0.0
    %1067 = vmatprep.subr.mxu0 0.0
    %1068 = vmatpush1.msra.mxu0 0.0
    %1069 = vmatprep.subr.mxu0 0.0
    %1070 = vmatpush1.msra.mxu0 0.0
    %1071 = vmatprep.subr.mxu0 0.0
    %1072 = vmatpush1.msra.mxu0 0.0
    %1073 = vmatprep.subr.mxu0 0.0
    %1074 = vmatpush1.msra.mxu0 0.0
    %1075 = vmatprep.subr.mxu0 0.0
    %1076 = vmatpush1.msra.mxu0 0.0
    %1077 = vmatprep.subr.mxu0 0.0
    %1078 = vmatpush1.msra.mxu0 0.0
    %1079 = vmatprep.subr.mxu0 0.0
    %1080 = vmatpush1.msra.mxu0 0.0
    %1081 = vmatprep.subr.mxu0 0.0
    %1082 = vmatpush1.msra.mxu0 0.0
    %1083 = vmatprep.subr.mxu0 0.0
    %1084 = vmatpush1.msra.mxu0 0.0
    %1085 = vmatprep.subr.mxu0 0.0
    %1086 = vmatpush1.msra.mxu0 0.0
    %1087 = vmatprep.mubr.f32.mxu0 0.0
    %1088 = vmatmul.mubr.f32.gmra.mrb[0].mxu0 %v1021
    %v1089 = vpop.f32.mrb[0].mxu0
    %v1090 = vadd.f32 %v1018, %v1089
    %v1091 = vpop.f32.mrb[0].mxu0
    %1092 = vdwg.mxu0
    %vm1093 = vcmask 25600
    %1094 = vst.msk [vmem:[#allocation2] sm:$0x3] %vm1093, %v1090
    // Predicated region
    $region82: #{combined_model_forward.1} parent=1 // pred_check
      _
    $region83: #{combined_model_forward.1} parent=1 // pred_check_branch
      %1096 = sbr.rel (0) target = $region85
    $region84: #{combined_model_forward.1} parent=1 // pred_region
      %s1098 = ssub.s32 32, 32
      %1099 = vsyncadd [#allocation3], %s1098
      %s1101 = sshll.u32 [#allocation2], 4
      %s1102 = int_to_ptr.vmem [resolvable:$true] %s1101
      %1104 = dma.vmem_to_hbm [thread:$0]  %s1102, 32, %s20, [#allocation3]
    $region85: #{combined_model_forward.1} parent=1 // pred_fallthru
      _
    // Predicated region
    $region86: #{combined_model_forward.1} parent=1 // pred_check
      _
    $region87: #{combined_model_forward.1} parent=1 // pred_check_branch
      %1106 = sbr.rel (0) target = $region89
    $region88: #{combined_model_forward.1} parent=1 // pred_region
      %1107 = dma.done [#allocation3], 32
    $region89: #{combined_model_forward.1} parent=1 // pred_fallthru
      _
    %1108 = vsyncpa [#allocation3], 1

</llo_original>
